<compile_context>
chip_gen: v7x
topology: tpu7x:2x2x1
jax: 0.10.0
libtpu: 0.0.40
codegen_flags: <defaults>
</compile_context>

<pallas_src>
import jax
import jax.numpy as jnp
from jax.experimental import pallas as pl
from jax.experimental.pallas import tpu as pltpu

IN_DIM = 768
HID_DIM = 6
OUT_DIM = 1
TB_DEFAULT = 2048  # batch tile; 2 buffers x 2048 x 768 x 4B = 12 MiB of x in flight


def _round_up(n: int, m: int) -> int:
    return ((n + m - 1) // m) * m


def mlp_kernel(x_ref, w1_ref, b1_ref, w2_ref, b2_ref, o_ref):
    # x_ref: (TB, 768)   w1_ref: (6, 768)   b1_ref: (1, 6)
    # w2_ref: (1, 6)     b2_ref: (1, 1)     o_ref: (TB, 1)
    x = x_ref[...]

    # Layer 1 on the MXU: contract x's feature axis with W1's feature axis
    # (W1 stored lane-dense as (6, 768); transposed-RHS contraction is native).
    h = jax.lax.dot_general(
        x, w1_ref[...],
        dimension_numbers=(((1,), (1,)), ((), ())),
        preferred_element_type=jnp.float32,
    )                                                   # (TB, 6)
    h = jnp.maximum(h + b1_ref[...], 0.0)               # bias + ReLU on the VPU

    # Layer 2 on the VPU/XLU: (TB,6) * (1,6) -> lane-reduce -> (TB,1).
    y = jnp.sum(h * w2_ref[...], axis=-1, keepdims=True) + b2_ref[...]
    o_ref[...] = y.astype(o_ref.dtype)


def mymodel_forward(x, w1, b1, w2, b2, *, tb: int = TB_DEFAULT):
    """x: (B, 768); w1: (6, 768); b1: (1, 6); w2: (1, 6); b2: (1, 1) -> (B, 1)."""
    B = x.shape[0]

    # Tile size: multiple of 8 (f32 sublane rule), capped so the grid has >= 2 steps
    # whenever B is big enough (keeps both v7x TensorCores busy), and capped by tb.
    tb = max(8, _round_up(tb, 8))
    half = _round_up(pl.cdiv(B, 2), 8)     # ~ceil(B/2), rounded to sublane multiple
    TB = max(8, min(tb, half))
    assert TB % 8 == 0

    grid = (pl.cdiv(B, TB),)

    weight_bytes = (w1.size + b1.size + w2.size + b2.size) * 4
    cost = pl.CostEstimate(
        flops=2 * B * IN_DIM * HID_DIM + 2 * B * HID_DIM * OUT_DIM,
        bytes_accessed=B * IN_DIM * 4 + B * OUT_DIM * 4 + weight_bytes,
        transcendentals=0,
    )

    # NOTE: no padding of x.  Pallas handles the partial trailing block: input rows
    # beyond B are unspecified, but compute is row-independent and the corresponding
    # output rows are masked on writeback, so they never reach HBM.
    out = pl.pallas_call(
        mlp_kernel,
        out_shape=jax.ShapeDtypeStruct((B, OUT_DIM), x.dtype),
        grid=grid,
        in_specs=[
            pl.BlockSpec((TB, IN_DIM), lambda i: (i, 0)),        # x: streamed per tile
            pl.BlockSpec((HID_DIM, IN_DIM), lambda i: (0, 0)),   # W1: resident
            pl.BlockSpec((1, HID_DIM), lambda i: (0, 0)),        # b1: resident
            pl.BlockSpec((1, HID_DIM), lambda i: (0, 0)),        # W2 row: resident
            pl.BlockSpec((1, OUT_DIM), lambda i: (0, 0)),        # b2: resident
        ],
        out_specs=pl.BlockSpec((TB, OUT_DIM), lambda i: (i, 0)),
        compiler_params=pltpu.CompilerParams(
            dimension_semantics=("parallel",),
            vmem_limit_bytes=48 * 1024 * 1024,
        ),
        cost_estimate=cost,
    )(x, w1, b1, w2, b2)

    return out


def init_params(key):
    # PyTorch nn.Linear default init: U(-1/sqrt(fan_in), 1/sqrt(fan_in)).
    k1, k2, k3, k4 = jax.random.split(key, 4)
    bound1 = 1.0 / jnp.sqrt(jnp.float32(IN_DIM))
    bound2 = 1.0 / jnp.sqrt(jnp.float32(HID_DIM))
    w1 = jax.random.uniform(k1, (HID_DIM, IN_DIM), jnp.float32, -bound1, bound1)
    b1 = jax.random.uniform(k2, (HID_DIM,), jnp.float32, -bound1, bound1)
    w2 = jax.random.uniform(k3, (OUT_DIM, HID_DIM), jnp.float32, -bound2, bound2)
    b2 = jax.random.uniform(k4, (OUT_DIM,), jnp.float32, -bound2, bound2)
    # Keep W1/W2 lane-dense (out, in); biases as 2D rows for TPU-friendly broadcasting.
    return w1, b1.reshape(1, HID_DIM), w2.reshape(1, HID_DIM), b2.reshape(1, OUT_DIM)


def _reference(x, w1, b1, w2, b2):
    h = jnp.maximum(x @ w1.T + b1, 0.0)
    return h @ w2.reshape(HID_DIM, OUT_DIM) + b2


if __name__ == "__main__":
    key = jax.random.PRNGKey(0)
    k_x, k_x2, k_p = jax.random.split(key, 3)
    w1, b1, w2, b2 = init_params(k_p)

    # Small-batch case (single tile).
    B = 8
    x = jax.random.normal(k_x, (B, IN_DIM), dtype=jnp.float32)
    out = mymodel_forward(x, w1, b1, w2, b2)
    jax.block_until_ready(out)
    ref = _reference(x, w1, b1, w2, b2)
    assert out.shape == (B, OUT_DIM)
    assert jnp.allclose(out, ref, atol=1e-5, rtol=1e-5)

    # Multi-tile case with a partial trailing block (exercises the no-pad B % TB != 0 path
    # and a >=2-step grid for megacore sharding).
    B2 = 140
    x2 = jax.random.normal(k_x2, (B2, IN_DIM), dtype=jnp.float32)
    out2 = mymodel_forward(x2, w1, b1, w2, b2, tb=64)
    jax.block_until_ready(out2)
    ref2 = _reference(x2, w1, b1, w2, b2)
    assert out2.shape == (B2, OUT_DIM)
    assert jnp.allclose(out2, ref2, atol=1e-5, rtol=1e-5)

    print("KERNEL_OK")
</pallas_src>

<mosaic_0001>
module attributes {stable_mosaic.version = 11 : i64} {
  func.func @mlp_kernel(%arg0: i32, %arg1: memref<8x768xf32, #tpu.memory_space<vmem>>, %arg2: memref<6x768xf32, #tpu.memory_space<vmem>>, %arg3: memref<1x6xf32, #tpu.memory_space<vmem>>, %arg4: memref<1x6xf32, #tpu.memory_space<vmem>>, %arg5: memref<1x1xf32, #tpu.memory_space<vmem>>, %arg6: memref<8x1xf32, #tpu.memory_space<vmem>>) attributes {dimension_semantics = [#tpu.dimension_semantics<parallel>], iteration_bounds = array<i64: 1>, scalar_prefetch = 0 : i64, scratch_operands = 0 : i64, tpu.core_type = #tpu.core_type<tc>, window_params = [{transform_indices = @transform_0, window_bounds = array<i64: 8, 768>}, {pipeline_mode = #tpu.pipeline_mode<synchronous>, transform_indices = @transform_1, window_bounds = array<i64: 6, 768>}, {pipeline_mode = #tpu.pipeline_mode<synchronous>, transform_indices = @transform_2, window_bounds = array<i64: 1, 6>}, {pipeline_mode = #tpu.pipeline_mode<synchronous>, transform_indices = @transform_3, window_bounds = array<i64: 1, 6>}, {pipeline_mode = #tpu.pipeline_mode<synchronous>, transform_indices = @transform_4, window_bounds = array<i64: 1, 1>}, {transform_indices = @transform_5, window_bounds = array<i64: 8, 1>}]} {
    %c0 = arith.constant 0 : index
    %c0_0 = arith.constant 0 : index
    %0 = vector.load %arg1[%c0, %c0_0] : memref<8x768xf32, #tpu.memory_space<vmem>>, vector<8x768xf32>
    %c0_1 = arith.constant 0 : index
    %c0_2 = arith.constant 0 : index
    %1 = vector.load %arg2[%c0_1, %c0_2] : memref<6x768xf32, #tpu.memory_space<vmem>>, vector<6x768xf32>
    %cst = arith.constant dense<0.000000e+00> : vector<8x6xf32>
    %2 = tpu.matmul %0, %1, %cst {dimension_numbers = #tpu.dot_dimension_numbers<[1], [1], [0], [0], [0, 0, 1, 0], [], []>} : vector<8x768xf32>, vector<6x768xf32>, vector<8x6xf32> -> vector<8x6xf32>
    %c0_3 = arith.constant 0 : index
    %c0_4 = arith.constant 0 : index
    %3 = vector.load %arg3[%c0_3, %c0_4] : memref<1x6xf32, #tpu.memory_space<vmem>>, vector<1x6xf32>
    %4 = vector.broadcast %3 : vector<1x6xf32> to vector<8x6xf32>
    %5 = arith.addf %2, %4 : vector<8x6xf32>
    %cst_5 = arith.constant 0.000000e+00 : f32
    %6 = vector.broadcast %cst_5 : f32 to vector<8x6xf32>
    %7 = arith.maximumf %5, %6 : vector<8x6xf32>
    %c0_6 = arith.constant 0 : index
    %c0_7 = arith.constant 0 : index
    %8 = vector.load %arg4[%c0_6, %c0_7] : memref<1x6xf32, #tpu.memory_space<vmem>>, vector<1x6xf32>
    %9 = vector.broadcast %8 : vector<1x6xf32> to vector<8x6xf32>
    %10 = arith.mulf %7, %9 : vector<8x6xf32>
    %cst_8 = arith.constant dense<0.000000e+00> : vector<8xf32>
    %11 = vector.multi_reduction <add>, %10, %cst_8 [1] : vector<8x6xf32> to vector<8xf32>
    %12 = vector.shape_cast %11 : vector<8xf32> to vector<8x1xf32>
    %c0_9 = arith.constant 0 : index
    %c0_10 = arith.constant 0 : index
    %13 = vector.load %arg5[%c0_9, %c0_10] : memref<1x1xf32, #tpu.memory_space<vmem>>, vector<1x1xf32>
    %14 = vector.broadcast %13 : vector<1x1xf32> to vector<8x1xf32>
    %15 = arith.addf %12, %14 : vector<8x1xf32>
    %c0_11 = arith.constant 0 : index
    %c0_12 = arith.constant 0 : index
    %16 = vector.load %arg6[%c0_11, %c0_12] : memref<8x1xf32, #tpu.memory_space<vmem>>, vector<8x1xf32>
    tpu.vector_store %arg6[%c0_11, %c0_12], %15 {strides = array<i32>} : memref<8x1xf32, #tpu.memory_space<vmem>>, vector<8x1xf32>,
    return
  }
  func.func @transform_0(%arg0: i32) -> (i32, i32) {
    %c0_i32 = arith.constant 0 : i32
    %c0_i32_0 = arith.constant 0 : i32
    return %arg0, %c0_i32 : i32, i32
  }
  func.func @transform_1(%arg0: i32) -> (i32, i32) {
    %c0_i32 = arith.constant 0 : i32
    %c0_i32_0 = arith.constant 0 : i32
    %c0_i32_1 = arith.constant 0 : i32
    return %c0_i32, %c0_i32_0 : i32, i32
  }
  func.func @transform_2(%arg0: i32) -> (i32, i32) {
    %c0_i32 = arith.constant 0 : i32
    %c0_i32_0 = arith.constant 0 : i32
    %c0_i32_1 = arith.constant 0 : i32
    return %c0_i32, %c0_i32_0 : i32, i32
  }
  func.func @transform_3(%arg0: i32) -> (i32, i32) {
    %c0_i32 = arith.constant 0 : i32
    %c0_i32_0 = arith.constant 0 : i32
    %c0_i32_1 = arith.constant 0 : i32
    return %c0_i32, %c0_i32_0 : i32, i32
  }
  func.func @transform_4(%arg0: i32) -> (i32, i32) {
    %c0_i32 = arith.constant 0 : i32
    %c0_i32_0 = arith.constant 0 : i32
    %c0_i32_1 = arith.constant 0 : i32
    return %c0_i32, %c0_i32_0 : i32, i32
  }
  func.func @transform_5(%arg0: i32) -> (i32, i32) {
    %c0_i32 = arith.constant 0 : i32
    %c0_i32_0 = arith.constant 0 : i32
    return %arg0, %c0_i32 : i32, i32
  }
}

</mosaic_0001>

<llo_original>
// kernel: tpu_custom_call.1
$region0: #{tpu_custom_call.1}
  #allocation0 [shape = 'u32[]', space=smem, size = 0x4, offset = 0x4, fixed_abs, tag = 'smem constant byte address 0x4 - core index']
  #allocation1 [shape = 'u32[144,128]{1,0:T(1,128)}', space=vmem, size = 0x12000, scoped, tag = 'internal scratch']
  #allocation2 [shape = 'f32[1,1]{1,0:T(1,128)S(1)}', space=vmem, size = 0x200, scoped, tag = 'scoped memory for tpu_custom_call.1']
  %s0 = inlined_call_operand.hbm [shape: f32[8,768], index: 0, kind: input, shape index: {}]
  %s1 = inlined_call_operand.hbm [shape: f32[6,768], index: 1, kind: input, shape index: {}]
  %s2 = inlined_call_operand.vmem [shape: f32[1,6], index: 2, kind: input, shape index: {}]
  %s3 = inlined_call_operand.vmem [shape: f32[1,6], index: 3, kind: input, shape index: {}]
  %s4 = inlined_call_operand.<no memory space> [shape: f32[1,1], index: 4, kind: input, shape index: {}]
  %s5 = inlined_call_operand.vmem [shape: f32[8,1], index: 5, kind: output, shape index: {}]
  %s6 = sld [smem:[#allocation0]]
  $region38: #{tpu_custom_call.1} parent=0
    _
  %s8 = ssub.s32 1, %s6
  %s9 = scalar_select 0, %s8, %s6
  %v10 = vstv %s4
  %11 = vst [vmem:[#allocation2] sm:$0x1] %v10
  $region1: #{tpu_custom_call.1} parent=0
    #allocation3 [shape = 'u8[24576]{0}', space=vmem, size = 0x6000, scoped, tag = 'input window, operand 0, single buffered']
    #allocation4 [shape = 's32[1]{0}', space=sflag, size = 0x4, scoped, tag = 'scoped memory for tpu_custom_call.1']
    #allocation5 [shape = 'u8[24576]{0}', space=vmem, size = 0x6000, scoped, tag = 'input window, operand 1, single buffered']
    #allocation6 [shape = 's32[1]{0}', space=sflag, size = 0x4, scoped, tag = 'scoped memory for tpu_custom_call.1']
    %12 = vsyncpa [#allocation4], 0
    %13 = vsyncpa [#allocation6], 0
    // Predicated region
    $region2: #{tpu_custom_call.1} parent=1 // pred_check
      _
    $region3: #{tpu_custom_call.1} parent=1 // pred_check_branch
      %15 = sbr.rel (0) target = $region5
    $region4: #{tpu_custom_call.1} parent=1 // pred_region
      %s17 = ssub.s32 768, 768
      %18 = vsyncadd [#allocation4], %s17
      %s20 = sshll.u32 [#allocation3], 4
      %s21 = int_to_ptr.vmem [resolvable:$true] %s20
      %23 = dma.hbm_to_vmem [thread:$0]  %s0, 768, %s21, [#allocation4]
    $region5: #{tpu_custom_call.1} parent=1 // pred_fallthru
      _
    // Predicated region
    $region6: #{tpu_custom_call.1} parent=1 // pred_check
      _
    $region7: #{tpu_custom_call.1} parent=1 // pred_check_branch
      %25 = sbr.rel (0) target = $region9
    $region8: #{tpu_custom_call.1} parent=1 // pred_region
      %s27 = ssub.s32 768, 768
      %28 = vsyncadd [#allocation6], %s27
      %s30 = sshll.u32 [#allocation5], 4
      %s31 = int_to_ptr.vmem [resolvable:$true] %s30
      %33 = dma.hbm_to_vmem [thread:$0]  %s1, 768, %s31, [#allocation6]
    $region9: #{tpu_custom_call.1} parent=1 // pred_fallthru
      _
    // Predicated region
    $region10: #{tpu_custom_call.1} parent=1 // pred_check
      _
    $region11: #{tpu_custom_call.1} parent=1 // pred_check_branch
      %35 = sbr.rel (0) target = $region13
    $region12: #{tpu_custom_call.1} parent=1 // pred_region
      _
    $region13: #{tpu_custom_call.1} parent=1 // pred_fallthru
      _
    // Predicated region
    $region14: #{tpu_custom_call.1} parent=1 // pred_check
      _
    $region15: #{tpu_custom_call.1} parent=1 // pred_check_branch
      %37 = sbr.rel (0) target = $region17
    $region16: #{tpu_custom_call.1} parent=1 // pred_region
      _
    $region17: #{tpu_custom_call.1} parent=1 // pred_fallthru
      _
    // Predicated region
    $region18: #{tpu_custom_call.1} parent=1 // pred_check
      _
    $region19: #{tpu_custom_call.1} parent=1 // pred_check_branch
      %39 = sbr.rel (0) target = $region21
    $region20: #{tpu_custom_call.1} parent=1 // pred_region
      _
    $region21: #{tpu_custom_call.1} parent=1 // pred_fallthru
      _
    // Predicated region
    $region22: #{tpu_custom_call.1} parent=1 // pred_check
      _
    $region23: #{tpu_custom_call.1} parent=1 // pred_check_branch
      %41 = sbr.rel (0) target = $region25
    $region24: #{tpu_custom_call.1} parent=1 // pred_region
      %42 = dma.done [#allocation4], 768
    $region25: #{tpu_custom_call.1} parent=1 // pred_fallthru
      _
    // Predicated region
    $region26: #{tpu_custom_call.1} parent=1 // pred_check
      _
    $region27: #{tpu_custom_call.1} parent=1 // pred_check_branch
      %44 = sbr.rel (0) target = $region29
    $region28: #{tpu_custom_call.1} parent=1 // pred_region
      %45 = dma.done [#allocation6], 768
    $region29: #{tpu_custom_call.1} parent=1 // pred_fallthru
      _
    %v46 = vld [vmem:[#allocation3] sm:$0xff]
    %v47 = vld [vmem:[#allocation3 + $0x8] sm:$0xff]
    %v48 = vld [vmem:[#allocation3 + $0x10] sm:$0xff]
    %v49 = vld [vmem:[#allocation3 + $0x18] sm:$0xff]
    %v50 = vld [vmem:[#allocation3 + $0x20] sm:$0xff]
    %v51 = vld [vmem:[#allocation3 + $0x28] sm:$0xff]
    %v52 = vld [vmem:[#allocation5] sm:$0x3f]
    %v53 = vld [vmem:[#allocation5 + $0x8] sm:$0x3f]
    %v54 = vld [vmem:[#allocation5 + $0x10] sm:$0x3f]
    %v55 = vld [vmem:[#allocation5 + $0x18] sm:$0x3f]
    %v56 = vld [vmem:[#allocation5 + $0x20] sm:$0x3f]
    %v57 = vld [vmem:[#allocation5 + $0x28] sm:$0x3f]
    %v58 = vld [vmem:[%s2] sm:$0x1]
    %v60 = vlaneseq
    %v61 = vshrl.u32 %v60, 7
    %v62 = vsub.s32 0, %v61
    %v63 = vrot.slane %v58, %v62
    %65 = vmatprep.subr.mxu0 %v53
    %66 = vmatpush1.xpose.msra.mxu0 %v52
    %67 = vmatprep.subr.mxu0 0.0
    %68 = vmatpush1.xpose.msra.mxu0 0.0
    %69 = vmatprep.subr.mxu0 0.0
    %70 = vmatpush1.xpose.msra.mxu0 0.0
    %71 = vmatprep.subr.mxu0 0.0
    %72 = vmatpush1.xpose.msra.mxu0 0.0
    %73 = vmatprep.subr.mxu0 0.0
    %74 = vmatpush1.xpose.msra.mxu0 0.0
    %75 = vmatprep.subr.mxu0 0.0
    %76 = vmatpush1.xpose.msra.mxu0 0.0
    %77 = vmatprep.subr.mxu0 0.0
    %78 = vmatpush1.xpose.msra.mxu0 0.0
    %79 = vmatprep.subr.mxu0 0.0
    %80 = vmatpush1.xpose.msra.mxu0 0.0
    %81 = vmatprep.subr.mxu0 0.0
    %82 = vmatpush1.xpose.msra.mxu0 0.0
    %83 = vmatprep.subr.mxu0 0.0
    %84 = vmatpush1.xpose.msra.mxu0 0.0
    %85 = vmatprep.subr.mxu0 0.0
    %86 = vmatpush1.xpose.msra.mxu0 0.0
    %87 = vmatprep.subr.mxu0 0.0
    %88 = vmatpush1.xpose.msra.mxu0 0.0
    %89 = vmatprep.subr.mxu0 0.0
    %90 = vmatpush1.xpose.msra.mxu0 0.0
    %91 = vmatprep.subr.mxu0 0.0
    %92 = vmatpush1.xpose.msra.mxu0 0.0
    %93 = vmatprep.subr.mxu0 0.0
    %94 = vmatpush1.xpose.msra.mxu0 0.0
    %95 = vmatprep.subr.mxu0 0.0
    %96 = vmatpush1.xpose.msra.mxu0 0.0
    %97 = vmatprep.subr.mxu0 0.0
    %98 = vmatpush1.xpose.msra.mxu0 0.0
    %99 = vmatprep.subr.mxu0 0.0
    %100 = vmatpush1.xpose.msra.mxu0 0.0
    %101 = vmatprep.subr.mxu0 0.0
    %102 = vmatpush1.xpose.msra.mxu0 0.0
    %103 = vmatprep.subr.mxu0 0.0
    %104 = vmatpush1.xpose.msra.mxu0 0.0
    %105 = vmatprep.subr.mxu0 0.0
    %106 = vmatpush1.xpose.msra.mxu0 0.0
    %107 = vmatprep.subr.mxu0 0.0
    %108 = vmatpush1.xpose.msra.mxu0 0.0
    %109 = vmatprep.subr.mxu0 0.0
    %110 = vmatpush1.xpose.msra.mxu0 0.0
    %111 = vmatprep.subr.mxu0 0.0
    %112 = vmatpush1.xpose.msra.mxu0 0.0
    %113 = vmatprep.subr.mxu0 0.0
    %114 = vmatpush1.xpose.msra.mxu0 0.0
    %115 = vmatprep.subr.mxu0 0.0
    %116 = vmatpush1.xpose.msra.mxu0 0.0
    %117 = vmatprep.subr.mxu0 0.0
    %118 = vmatpush1.xpose.msra.mxu0 0.0
    %119 = vmatprep.subr.mxu0 0.0
    %120 = vmatpush1.xpose.msra.mxu0 0.0
    %121 = vmatprep.subr.mxu0 0.0
    %122 = vmatpush1.xpose.msra.mxu0 0.0
    %123 = vmatprep.subr.mxu0 0.0
    %124 = vmatpush1.xpose.msra.mxu0 0.0
    %125 = vmatprep.subr.mxu0 0.0
    %126 = vmatpush1.xpose.msra.mxu0 0.0
    %127 = vmatprep.subr.mxu0 0.0
    %128 = vmatpush1.xpose.msra.mxu0 0.0
    %129 = vmatprep.mubr.f32.mxu0 %v47
    %130 = vmatmul.mubr.f32.gmra.mrb[0].mxu0 %v46
    %v131 = vpop.f32.mrb[0].mxu0
    %v132 = vadd.f32 %v63, %v131
    %v133 = vpop.f32.mrb[0].mxu0
    %134 = vdwg.mxu0
    %135 = vmatprep.subr.mxu0 %v55
    %136 = vmatpush1.xpose.msra.mxu0 %v54
    %137 = vmatprep.subr.mxu0 0.0
    %138 = vmatpush1.xpose.msra.mxu0 0.0
    %139 = vmatprep.subr.mxu0 0.0
    %140 = vmatpush1.xpose.msra.mxu0 0.0
    %141 = vmatprep.subr.mxu0 0.0
    %142 = vmatpush1.xpose.msra.mxu0 0.0
    %143 = vmatprep.subr.mxu0 0.0
    %144 = vmatpush1.xpose.msra.mxu0 0.0
    %145 = vmatprep.subr.mxu0 0.0
    %146 = vmatpush1.xpose.msra.mxu0 0.0
    %147 = vmatprep.subr.mxu0 0.0
    %148 = vmatpush1.xpose.msra.mxu0 0.0
    %149 = vmatprep.subr.mxu0 0.0
    %150 = vmatpush1.xpose.msra.mxu0 0.0
    %151 = vmatprep.subr.mxu0 0.0
    %152 = vmatpush1.xpose.msra.mxu0 0.0
    %153 = vmatprep.subr.mxu0 0.0
    %154 = vmatpush1.xpose.msra.mxu0 0.0
    %155 = vmatprep.subr.mxu0 0.0
    %156 = vmatpush1.xpose.msra.mxu0 0.0
    %157 = vmatprep.subr.mxu0 0.0
    %158 = vmatpush1.xpose.msra.mxu0 0.0
    %159 = vmatprep.subr.mxu0 0.0
    %160 = vmatpush1.xpose.msra.mxu0 0.0
    %161 = vmatprep.subr.mxu0 0.0
    %162 = vmatpush1.xpose.msra.mxu0 0.0
    %163 = vmatprep.subr.mxu0 0.0
    %164 = vmatpush1.xpose.msra.mxu0 0.0
    %165 = vmatprep.subr.mxu0 0.0
    %166 = vmatpush1.xpose.msra.mxu0 0.0
    %167 = vmatprep.subr.mxu0 0.0
    %168 = vmatpush1.xpose.msra.mxu0 0.0
    %169 = vmatprep.subr.mxu0 0.0
    %170 = vmatpush1.xpose.msra.mxu0 0.0
    %171 = vmatprep.subr.mxu0 0.0
    %172 = vmatpush1.xpose.msra.mxu0 0.0
    %173 = vmatprep.subr.mxu0 0.0
    %174 = vmatpush1.xpose.msra.mxu0 0.0
    %175 = vmatprep.subr.mxu0 0.0
    %176 = vmatpush1.xpose.msra.mxu0 0.0
    %177 = vmatprep.subr.mxu0 0.0
    %178 = vmatpush1.xpose.msra.mxu0 0.0
    %179 = vmatprep.subr.mxu0 0.0
    %180 = vmatpush1.xpose.msra.mxu0 0.0
    %181 = vmatprep.subr.mxu0 0.0
    %182 = vmatpush1.xpose.msra.mxu0 0.0
    %183 = vmatprep.subr.mxu0 0.0
    %184 = vmatpush1.xpose.msra.mxu0 0.0
    %185 = vmatprep.subr.mxu0 0.0
    %186 = vmatpush1.xpose.msra.mxu0 0.0
    %187 = vmatprep.subr.mxu0 0.0
    %188 = vmatpush1.xpose.msra.mxu0 0.0
    %189 = vmatprep.subr.mxu0 0.0
    %190 = vmatpush1.xpose.msra.mxu0 0.0
    %191 = vmatprep.subr.mxu0 0.0
    %192 = vmatpush1.xpose.msra.mxu0 0.0
    %193 = vmatprep.subr.mxu0 0.0
    %194 = vmatpush1.xpose.msra.mxu0 0.0
    %195 = vmatprep.subr.mxu0 0.0
    %196 = vmatpush1.xpose.msra.mxu0 0.0
    %197 = vmatprep.subr.mxu0 0.0
    %198 = vmatpush1.xpose.msra.mxu0 0.0
    %199 = vmatprep.mubr.f32.mxu0 %v49
    %200 = vmatmul.mubr.f32.gmra.mrb[0].mxu0 %v48
    %v201 = vpop.f32.mrb[0].mxu0
    %v202 = vadd.f32 %v132, %v201
    %v203 = vpop.f32.mrb[0].mxu0
    %204 = vdwg.mxu0
    %205 = vmatprep.subr.mxu0 %v57
    %206 = vmatpush1.xpose.msra.mxu0 %v56
    %207 = vmatprep.subr.mxu0 0.0
    %208 = vmatpush1.xpose.msra.mxu0 0.0
    %209 = vmatprep.subr.mxu0 0.0
    %210 = vmatpush1.xpose.msra.mxu0 0.0
    %211 = vmatprep.subr.mxu0 0.0
    %212 = vmatpush1.xpose.msra.mxu0 0.0
    %213 = vmatprep.subr.mxu0 0.0
    %214 = vmatpush1.xpose.msra.mxu0 0.0
    %215 = vmatprep.subr.mxu0 0.0
    %216 = vmatpush1.xpose.msra.mxu0 0.0
    %217 = vmatprep.subr.mxu0 0.0
    %218 = vmatpush1.xpose.msra.mxu0 0.0
    %219 = vmatprep.subr.mxu0 0.0
    %220 = vmatpush1.xpose.msra.mxu0 0.0
    %221 = vmatprep.subr.mxu0 0.0
    %222 = vmatpush1.xpose.msra.mxu0 0.0
    %223 = vmatprep.subr.mxu0 0.0
    %224 = vmatpush1.xpose.msra.mxu0 0.0
    %225 = vmatprep.subr.mxu0 0.0
    %226 = vmatpush1.xpose.msra.mxu0 0.0
    %227 = vmatprep.subr.mxu0 0.0
    %228 = vmatpush1.xpose.msra.mxu0 0.0
    %229 = vmatprep.subr.mxu0 0.0
    %230 = vmatpush1.xpose.msra.mxu0 0.0
    %231 = vmatprep.subr.mxu0 0.0
    %232 = vmatpush1.xpose.msra.mxu0 0.0
    %233 = vmatprep.subr.mxu0 0.0
    %234 = vmatpush1.xpose.msra.mxu0 0.0
    %235 = vmatprep.subr.mxu0 0.0
    %236 = vmatpush1.xpose.msra.mxu0 0.0
    %237 = vmatprep.subr.mxu0 0.0
    %238 = vmatpush1.xpose.msra.mxu0 0.0
    %239 = vmatprep.subr.mxu0 0.0
    %240 = vmatpush1.xpose.msra.mxu0 0.0
    %241 = vmatprep.subr.mxu0 0.0
    %242 = vmatpush1.xpose.msra.mxu0 0.0
    %243 = vmatprep.subr.mxu0 0.0
    %244 = vmatpush1.xpose.msra.mxu0 0.0
    %245 = vmatprep.subr.mxu0 0.0
    %246 = vmatpush1.xpose.msra.mxu0 0.0
    %247 = vmatprep.subr.mxu0 0.0
    %248 = vmatpush1.xpose.msra.mxu0 0.0
    %249 = vmatprep.subr.mxu0 0.0
    %250 = vmatpush1.xpose.msra.mxu0 0.0
    %251 = vmatprep.subr.mxu0 0.0
    %252 = vmatpush1.xpose.msra.mxu0 0.0
    %253 = vmatprep.subr.mxu0 0.0
    %254 = vmatpush1.xpose.msra.mxu0 0.0
    %255 = vmatprep.subr.mxu0 0.0
    %256 = vmatpush1.xpose.msra.mxu0 0.0
    %257 = vmatprep.subr.mxu0 0.0
    %258 = vmatpush1.xpose.msra.mxu0 0.0
    %259 = vmatprep.subr.mxu0 0.0
    %260 = vmatpush1.xpose.msra.mxu0 0.0
    %261 = vmatprep.subr.mxu0 0.0
    %262 = vmatpush1.xpose.msra.mxu0 0.0
    %263 = vmatprep.subr.mxu0 0.0
    %264 = vmatpush1.xpose.msra.mxu0 0.0
    %265 = vmatprep.subr.mxu0 0.0
    %266 = vmatpush1.xpose.msra.mxu0 0.0
    %267 = vmatprep.subr.mxu0 0.0
    %268 = vmatpush1.xpose.msra.mxu0 0.0
    %269 = vmatprep.mubr.f32.mxu0 %v51
    %270 = vmatmul.mubr.f32.gmra.mrb[0].mxu0 %v50
    %v271 = vpop.f32.mrb[0].mxu0
    %v272 = vadd.f32 %v202, %v271
    %v273 = vpop.f32.mrb[0].mxu0
    %274 = vdwg.mxu0
    %v275 = vmax.f32 %v272, 0.0
    %v276 = vld [vmem:[%s3] sm:$0x1]
    %v278 = vlaneseq
    %v279 = vshrl.u32 %v278, 7
    %v280 = vsub.s32 0, %v279
    %v281 = vrot.slane %v276, %v280
    %v283 = vmul.f32 %v275, %v281
    %vm284 = vcmask 48128
    %v285 = vsel %vm284, %v283, 0.0
    %286 = vadd.xlane.f32.xlu0 %v285
    %v287 = vpop.xlane.xlu0 %286
    %v288 = vld [vmem:[#allocation2] sm:$0x1]
    %v290 = vlaneseq
    %v291 = vshrl.u32 %v290, 7
    %v292 = vsub.s32 0, %v291
    %v293 = vrot.slane %v288, %v292
    %v295 = vadd.f32 %v287, %v293
    %vm296 = vcmask 7168
    %297 = vst.msk [vmem:[%s5] sm:$0xff] %vm296, %v295
    // Predicated region
    $region30: #{tpu_custom_call.1} parent=1 // pred_check
      _
    $region31: #{tpu_custom_call.1} parent=1 // pred_check_branch
      %299 = sbr.rel (0) target = $region33
    $region32: #{tpu_custom_call.1} parent=1 // pred_region
      _
    $region33: #{tpu_custom_call.1} parent=1 // pred_fallthru
      _
    // Predicated region
    $region34: #{tpu_custom_call.1} parent=1 // pred_check
      _
    $region35: #{tpu_custom_call.1} parent=1 // pred_check_branch
      %301 = sbr.rel (0) target = $region37
    $region36: #{tpu_custom_call.1} parent=1 // pred_region
      _
    $region37: #{tpu_custom_call.1} parent=1 // pred_fallthru
      _
    %302 = vsyncpa [#allocation4], 1
    %303 = vsyncpa [#allocation6], 1

</llo_original>
